<compile_context>
chip_gen: v6e
topology: v6e:2x2x1
jax: 0.10.0
libtpu: 0.0.40
codegen_flags: <defaults>
</compile_context>

<pallas_src>
import jax
import jax.numpy as jnp
from jax import lax
from jax.experimental import pallas as pl
from jax.experimental.pallas import tpu as pltpu


def _leaky_relu(x, slope=0.01):
    # torch.nn.LeakyReLU default negative_slope = 0.01
    # max(x, 0.01*x) == leaky_relu(x) for slope in (0, 1)
    return jnp.maximum(x, slope * x)


def critic_kernel(x_ref, h0_ref, c0_ref,
                  w_cat_ref, bias_ref,
                  w1t_ref, b1_ref, w2t_ref, b2_ref, w3row_ref, b3_ref,
                  out_ref, hn_ref, cn_ref):
    seq = x_ref.shape[0]
    H = h0_ref.shape[-1]

    # Hoist all weight / bias loads out of the recurrence (no transposes).
    w_cat = w_cat_ref[...]        # (input_dim + H, 4H)
    bias = bias_ref[...]          # (1, 4H)   (= b_ih + b_hh, pre-folded)
    w1t = w1t_ref[...]            # (H, 128)
    b1 = b1_ref[...]              # (1, 128)
    w2t = w2t_ref[...]            # (128, 128)
    b2 = b2_ref[...]              # (1, 128)
    w3row = w3row_ref[...]        # (1, 128)
    b3 = b3_ref[...]              # (1, 1)

    # Lane mask selecting the g-gate region [2H, 3H) of the 4H gates vector.
    lane = lax.broadcasted_iota(jnp.int32, (1, 4 * H), 1)
    g_mask = jnp.logical_and(lane >= 2 * H, lane < 3 * H)

    def step(t, carry):
        h, c = carry
        x_t = x_ref[t]                                  # (B, input_dim)
        xh = jnp.concatenate([x_t, h], axis=-1)         # (B, input_dim + H)
        # Single fused gate matmul: (B, D+H) @ (D+H, 4H)
        gates = jnp.dot(xh, w_cat,
                        preferred_element_type=jnp.float32) + bias  # (B, 4H)

        # Two full-width EUP pushes, then pick i/f/o from sigmoid and g from tanh.
        sig = jax.nn.sigmoid(gates)
        th = jnp.tanh(gates)
        act = jnp.where(g_mask, th, sig)                # (B, 4H)
        i = act[:, 0:H]
        f = act[:, H:2 * H]
        g = act[:, 2 * H:3 * H]
        o = act[:, 3 * H:4 * H]

        c_new = f * c + i * g
        h_new = o * jnp.tanh(c_new)

        # Value head: Linear -> LeakyReLU -> Linear -> LeakyReLU -> Linear(128,1)
        y = _leaky_relu(jnp.dot(h_new, w1t,
                                preferred_element_type=jnp.float32) + b1)
        y = _leaky_relu(jnp.dot(y, w2t,
                                preferred_element_type=jnp.float32) + b2)
        # N=1 output "matmul" as VPU multiply + lane reduction (no MXU round-trip).
        v = jnp.sum(y * w3row, axis=-1, keepdims=True) + b3   # (B, 1)
        out_ref[t] = v
        return (h_new, c_new)

    h_fin, c_fin = lax.fori_loop(0, seq, step, (h0_ref[0], c0_ref[0]),
                                 unroll=True)
    hn_ref[0] = h_fin
    cn_ref[0] = c_fin


def init_critic_params(key, input_dim, hidden_dim):
    """Parameters in PyTorch layout (W_ih: (4H, D), Linear: (out, in))."""
    ks = jax.random.split(key, 10)
    kl = 1.0 / float(hidden_dim) ** 0.5
    k1 = 1.0 / float(hidden_dim) ** 0.5
    k2 = 1.0 / 128.0 ** 0.5

    def u(k, shape, bound):
        return jax.random.uniform(k, shape, jnp.float32, -bound, bound)

    return dict(
        w_ih=u(ks[0], (4 * hidden_dim, input_dim), kl),
        w_hh=u(ks[1], (4 * hidden_dim, hidden_dim), kl),
        b_ih=u(ks[2], (1, 4 * hidden_dim), kl),
        b_hh=u(ks[3], (1, 4 * hidden_dim), kl),
        w1=u(ks[4], (128, hidden_dim), k1),
        b1=u(ks[5], (1, 128), k1),
        w2=u(ks[6], (128, 128), k2),
        b2=u(ks[7], (1, 128), k2),
        w3=u(ks[8], (1, 128), k2),
        b3=u(ks[9], (1, 1), k2),
    )


def prepare_critic_params(params):
    """One-time layout transformation so the kernel consumes (K, N) weights
    directly: no transposes and one fused gate matmul inside the kernel."""
    w_cat = jnp.concatenate([params["w_ih"], params["w_hh"]], axis=1).T  # (D+H, 4H)
    return dict(
        w_cat=jnp.asarray(w_cat, jnp.float32),
        bias=jnp.asarray(params["b_ih"] + params["b_hh"], jnp.float32),  # (1, 4H)
        w1t=jnp.asarray(params["w1"].T, jnp.float32),                    # (H, 128)
        b1=jnp.asarray(params["b1"], jnp.float32),                       # (1, 128)
        w2t=jnp.asarray(params["w2"].T, jnp.float32),                    # (128, 128)
        b2=jnp.asarray(params["b2"], jnp.float32),                       # (1, 128)
        w3row=jnp.asarray(params["w3"], jnp.float32),                    # (1, 128)
        b3=jnp.asarray(params["b3"], jnp.float32),                       # (1, 1)
    )


def critic_forward(states, prepared, hidden_state_dim, recurrent_layers=1,
                   hidden_state=None):
    # TODO(synk): recurrent_layers > 1 (stacked LSTM) and the PackedSequence
    # batched path are not implemented; the reference module defaults to a
    # single layer and the non-packed 1-D `states` path.
    assert recurrent_layers == 1
    x = states.reshape(1, 1, states.shape[0]).astype(jnp.float32)
    seq, B, _ = x.shape
    H = hidden_state_dim
    if hidden_state is None:
        h0 = jnp.zeros((recurrent_layers, B, H), jnp.float32)
        c0 = jnp.zeros((recurrent_layers, B, H), jnp.float32)
    else:
        h0, c0 = hidden_state

    vmem = pl.BlockSpec(memory_space=pltpu.MemorySpace.VMEM)
    out, h_n, c_n = pl.pallas_call(
        critic_kernel,
        out_shape=(
            jax.ShapeDtypeStruct((seq, B, 1), jnp.float32),
            jax.ShapeDtypeStruct((recurrent_layers, B, H), jnp.float32),
            jax.ShapeDtypeStruct((recurrent_layers, B, H), jnp.float32),
        ),
        in_specs=[vmem] * 11,
        out_specs=(vmem, vmem, vmem),
    )(x, h0, c0,
      prepared["w_cat"], prepared["bias"],
      prepared["w1t"], prepared["b1"],
      prepared["w2t"], prepared["b2"],
      prepared["w3row"], prepared["b3"])
    return jnp.squeeze(out), (h_n, c_n)


def critic_forward_ref(states, params, H):
    """Pure-JAX reference matching torch semantics (PyTorch-layout params)."""
    x = states.reshape(1, 1, -1).astype(jnp.float32)
    h = jnp.zeros((1, H), jnp.float32)
    c = jnp.zeros((1, H), jnp.float32)
    outs = []
    for t in range(x.shape[0]):
        gates = (x[t] @ params["w_ih"].T + h @ params["w_hh"].T
                 + params["b_ih"] + params["b_hh"])
        i = jax.nn.sigmoid(gates[:, :H])
        f = jax.nn.sigmoid(gates[:, H:2 * H])
        g = jnp.tanh(gates[:, 2 * H:3 * H])
        o = jax.nn.sigmoid(gates[:, 3 * H:])
        c = f * c + i * g
        h = o * jnp.tanh(c)
        y = h @ params["w1"].T + params["b1"]
        y = jnp.where(y > 0, y, 0.01 * y)
        y = y @ params["w2"].T + params["b2"]
        y = jnp.where(y > 0, y, 0.01 * y)
        outs.append(y @ params["w3"].T + params["b3"])
    out = jnp.stack(outs)
    return jnp.squeeze(out), (h[None], c[None])


if __name__ == "__main__":
    INPUT_DIM = 32
    HIDDEN_DIM = 32

    key = jax.random.PRNGKey(0)
    k_params, k_states = jax.random.split(key)
    params = init_critic_params(k_params, INPUT_DIM, HIDDEN_DIM)
    prepared = prepare_critic_params(params)   # pre-transpose / fuse once
    states = jax.random.normal(k_states, (INPUT_DIM,), jnp.float32)

    value, (h_n, c_n) = critic_forward(states, prepared, HIDDEN_DIM)
    jax.block_until_ready((value, h_n, c_n))

    value_ref, (h_ref, c_ref) = critic_forward_ref(states, params, HIDDEN_DIM)
    assert value.shape == value_ref.shape == ()
    assert h_n.shape == (1, 1, HIDDEN_DIM) and c_n.shape == (1, 1, HIDDEN_DIM)
    assert jnp.allclose(value, value_ref, atol=1e-4, rtol=1e-4)
    assert jnp.allclose(h_n[0], h_ref, atol=1e-4, rtol=1e-4)
    assert jnp.allclose(c_n[0], c_ref, atol=1e-4, rtol=1e-4)

    print("KERNEL_OK")
</pallas_src>

<mosaic_0001>
module attributes {stable_mosaic.version = 11 : i64} {
  func.func @critic_kernel(%arg0: memref<1x1x32xf32, #tpu.memory_space<vmem>>, %arg1: memref<1x1x32xf32, #tpu.memory_space<vmem>>, %arg2: memref<1x1x32xf32, #tpu.memory_space<vmem>>, %arg3: memref<64x128xf32, #tpu.memory_space<vmem>>, %arg4: memref<1x128xf32, #tpu.memory_space<vmem>>, %arg5: memref<32x128xf32, #tpu.memory_space<vmem>>, %arg6: memref<1x128xf32, #tpu.memory_space<vmem>>, %arg7: memref<128x128xf32, #tpu.memory_space<vmem>>, %arg8: memref<1x128xf32, #tpu.memory_space<vmem>>, %arg9: memref<1x128xf32, #tpu.memory_space<vmem>>, %arg10: memref<1x1xf32, #tpu.memory_space<vmem>>, %arg11: memref<1x1x1xf32, #tpu.memory_space<vmem>>, %arg12: memref<1x1x32xf32, #tpu.memory_space<vmem>>, %arg13: memref<1x1x32xf32, #tpu.memory_space<vmem>>) attributes {dimension_semantics = [], scalar_prefetch = 0 : i64, scratch_operands = 0 : i64, tpu.core_type = #tpu.core_type<tc>} {
    %c0 = arith.constant 0 : index
    %c0_0 = arith.constant 0 : index
    %0 = vector.load %arg3[%c0, %c0_0] : memref<64x128xf32, #tpu.memory_space<vmem>>, vector<64x128xf32>
    %c0_1 = arith.constant 0 : index
    %c0_2 = arith.constant 0 : index
    %1 = vector.load %arg4[%c0_1, %c0_2] : memref<1x128xf32, #tpu.memory_space<vmem>>, vector<1x128xf32>
    %c0_3 = arith.constant 0 : index
    %c0_4 = arith.constant 0 : index
    %2 = vector.load %arg5[%c0_3, %c0_4] : memref<32x128xf32, #tpu.memory_space<vmem>>, vector<32x128xf32>
    %c0_5 = arith.constant 0 : index
    %c0_6 = arith.constant 0 : index
    %3 = vector.load %arg6[%c0_5, %c0_6] : memref<1x128xf32, #tpu.memory_space<vmem>>, vector<1x128xf32>
    %c0_7 = arith.constant 0 : index
    %c0_8 = arith.constant 0 : index
    %4 = vector.load %arg7[%c0_7, %c0_8] : memref<128x128xf32, #tpu.memory_space<vmem>>, vector<128x128xf32>
    %c0_9 = arith.constant 0 : index
    %c0_10 = arith.constant 0 : index
    %5 = vector.load %arg8[%c0_9, %c0_10] : memref<1x128xf32, #tpu.memory_space<vmem>>, vector<1x128xf32>
    %c0_11 = arith.constant 0 : index
    %c0_12 = arith.constant 0 : index
    %6 = vector.load %arg9[%c0_11, %c0_12] : memref<1x128xf32, #tpu.memory_space<vmem>>, vector<1x128xf32>
    %c0_13 = arith.constant 0 : index
    %c0_14 = arith.constant 0 : index
    %7 = vector.load %arg10[%c0_13, %c0_14] : memref<1x1xf32, #tpu.memory_space<vmem>>, vector<1x1xf32>
    %8 = tpu.iota {dimensions = array<i32: 1>} : vector<1x128xi32>
    %c64_i32 = arith.constant 64 : i32
    %9 = vector.broadcast %c64_i32 : i32 to vector<1x128xi32>
    %10 = arith.cmpi sge, %8, %9 : vector<1x128xi32>
    %c96_i32 = arith.constant 96 : i32
    %11 = vector.broadcast %c96_i32 : i32 to vector<1x128xi32>
    %12 = arith.cmpi slt, %8, %11 : vector<1x128xi32>
    %13 = arith.andi %10, %12 : vector<1x128xi1>
    %c0_15 = arith.constant 0 : index
    %c0_16 = arith.constant 0 : index
    %c0_17 = arith.constant 0 : index
    %14 = vector.load %arg1[%c0_15, %c0_16, %c0_17] : memref<1x1x32xf32, #tpu.memory_space<vmem>>, vector<1x1x32xf32>
    %15 = vector.shape_cast %14 : vector<1x1x32xf32> to vector<1x32xf32>
    %c0_18 = arith.constant 0 : index
    %c0_19 = arith.constant 0 : index
    %c0_20 = arith.constant 0 : index
    %16 = vector.load %arg2[%c0_18, %c0_19, %c0_20] : memref<1x1x32xf32, #tpu.memory_space<vmem>>, vector<1x1x32xf32>
    %17 = vector.shape_cast %16 : vector<1x1x32xf32> to vector<1x32xf32>
    %c0_i32 = arith.constant 0 : i32
    %18 = arith.index_cast %c0_i32 : i32 to index
    %c0_21 = arith.constant 0 : index
    %c0_22 = arith.constant 0 : index
    %19 = vector.load %arg0[%18, %c0_21, %c0_22] : memref<1x1x32xf32, #tpu.memory_space<vmem>>, vector<1x1x32xf32>
    %20 = vector.shape_cast %19 : vector<1x1x32xf32> to vector<1x32xf32>
    %21 = tpu.concatenate %20, %15 in 1 : vector<1x32xf32>, vector<1x32xf32> -> vector<1x64xf32>
    %cst = arith.constant dense<0.000000e+00> : vector<1x128xf32>
    %22 = tpu.matmul %21, %0, %cst {dimension_numbers = #tpu.dot_dimension_numbers<[1], [0], [0], [1], [0, 0, 1, 1], [], []>} : vector<1x64xf32>, vector<64x128xf32>, vector<1x128xf32> -> vector<1x128xf32>
    %23 = arith.addf %22, %1 : vector<1x128xf32>
    %24 = arith.negf %23 : vector<1x128xf32>
    %25 = math.exp %24 : vector<1x128xf32>
    %cst_23 = arith.constant 1.000000e+00 : f32
    %26 = vector.broadcast %cst_23 : f32 to vector<1x128xf32>
    %27 = arith.addf %26, %25 : vector<1x128xf32>
    %28 = arith.divf %26, %27 : vector<1x128xf32>
    %29 = math.tanh %23 : vector<1x128xf32>
    %30 = arith.select %13, %29, %28 : vector<1x128xi1>, vector<1x128xf32>
    %31 = vector.extract_strided_slice %30 {offsets = [0, 0], sizes = [1, 32], strides = [1, 1]} : vector<1x128xf32> to vector<1x32xf32>
    %32 = vector.extract_strided_slice %30 {offsets = [0, 32], sizes = [1, 32], strides = [1, 1]} : vector<1x128xf32> to vector<1x32xf32>
    %33 = vector.extract_strided_slice %30 {offsets = [0, 64], sizes = [1, 32], strides = [1, 1]} : vector<1x128xf32> to vector<1x32xf32>
    %34 = vector.extract_strided_slice %30 {offsets = [0, 96], sizes = [1, 32], strides = [1, 1]} : vector<1x128xf32> to vector<1x32xf32>
    %35 = arith.mulf %32, %17 : vector<1x32xf32>
    %36 = arith.mulf %31, %33 : vector<1x32xf32>
    %37 = arith.addf %35, %36 : vector<1x32xf32>
    %38 = math.tanh %37 : vector<1x32xf32>
    %39 = arith.mulf %34, %38 : vector<1x32xf32>
    %cst_24 = arith.constant dense<0.000000e+00> : vector<1x128xf32>
    %40 = tpu.matmul %39, %2, %cst_24 {dimension_numbers = #tpu.dot_dimension_numbers<[1], [0], [0], [1], [0, 0, 1, 1], [], []>} : vector<1x32xf32>, vector<32x128xf32>, vector<1x128xf32> -> vector<1x128xf32>
    %41 = arith.addf %40, %3 : vector<1x128xf32>
    %cst_25 = arith.constant 0.00999999977 : f32
    %42 = vector.broadcast %cst_25 : f32 to vector<1x128xf32>
    %43 = arith.mulf %42, %41 : vector<1x128xf32>
    %44 = arith.maximumf %41, %43 : vector<1x128xf32>
    %cst_26 = arith.constant dense<0.000000e+00> : vector<1x128xf32>
    %45 = tpu.matmul %44, %4, %cst_26 {dimension_numbers = #tpu.dot_dimension_numbers<[1], [0], [0], [1], [0, 0, 1, 1], [], []>} : vector<1x128xf32>, vector<128x128xf32>, vector<1x128xf32> -> vector<1x128xf32>
    %46 = arith.addf %45, %5 : vector<1x128xf32>
    %cst_27 = arith.constant 0.00999999977 : f32
    %47 = vector.broadcast %cst_27 : f32 to vector<1x128xf32>
    %48 = arith.mulf %47, %46 : vector<1x128xf32>
    %49 = arith.maximumf %46, %48 : vector<1x128xf32>
    %50 = arith.mulf %49, %6 : vector<1x128xf32>
    %cst_28 = arith.constant dense<0.000000e+00> : vector<1xf32>
    %51 = vector.multi_reduction <add>, %50, %cst_28 [1] : vector<1x128xf32> to vector<1xf32>
    %52 = vector.shape_cast %51 : vector<1xf32> to vector<1x1xf32>
    %53 = arith.addf %52, %7 : vector<1x1xf32>
    %54 = arith.index_cast %c0_i32 : i32 to index
    %c0_29 = arith.constant 0 : index
    %c0_30 = arith.constant 0 : index
    %55 = vector.load %arg11[%54, %c0_29, %c0_30] : memref<1x1x1xf32, #tpu.memory_space<vmem>>, vector<1x1x1xf32>
    %56 = vector.shape_cast %55 : vector<1x1x1xf32> to vector<1x1xf32>
    %57 = vector.shape_cast %53 : vector<1x1xf32> to vector<1x1x1xf32>
    tpu.vector_store %arg11[%54, %c0_29, %c0_30], %57 {strides = array<i32>} : memref<1x1x1xf32, #tpu.memory_space<vmem>>, vector<1x1x1xf32>,
    %c1_i32 = arith.constant 1 : i32
    %c0_31 = arith.constant 0 : index
    %c0_32 = arith.constant 0 : index
    %c0_33 = arith.constant 0 : index
    %58 = vector.load %arg12[%c0_31, %c0_32, %c0_33] : memref<1x1x32xf32, #tpu.memory_space<vmem>>, vector<1x1x32xf32>
    %59 = vector.shape_cast %58 : vector<1x1x32xf32> to vector<1x32xf32>
    %60 = vector.shape_cast %39 : vector<1x32xf32> to vector<1x1x32xf32>
    tpu.vector_store %arg12[%c0_31, %c0_32, %c0_33], %60 {strides = array<i32>} : memref<1x1x32xf32, #tpu.memory_space<vmem>>, vector<1x1x32xf32>,
    %c0_34 = arith.constant 0 : index
    %c0_35 = arith.constant 0 : index
    %c0_36 = arith.constant 0 : index
    %61 = vector.load %arg13[%c0_34, %c0_35, %c0_36] : memref<1x1x32xf32, #tpu.memory_space<vmem>>, vector<1x1x32xf32>
    %62 = vector.shape_cast %61 : vector<1x1x32xf32> to vector<1x32xf32>
    %63 = vector.shape_cast %37 : vector<1x32xf32> to vector<1x1x32xf32>
    tpu.vector_store %arg13[%c0_34, %c0_35, %c0_36], %63 {strides = array<i32>} : memref<1x1x32xf32, #tpu.memory_space<vmem>>, vector<1x1x32xf32>,
    return
  }
}

</mosaic_0001>

<llo_original>
// kernel: tpu_custom_call.1
$region0: #{tpu_custom_call.1}
  #allocation0 [shape = 'u32[]', space=smem, size = 0x4, offset = 0x4, fixed_abs, tag = 'smem constant byte address 0x4 - core index']
  #allocation1 [shape = 'u32[144,128]{1,0:T(1,128)}', space=vmem, size = 0x12000, scoped, tag = 'internal scratch']
  #allocation2 [shape = 'f32[1,1]{1,0:T(1,128)S(1)}', space=vmem, size = 0x200, scoped, tag = 'scoped memory for tpu_custom_call.1']
  %s0 = inlined_call_operand.vmem [shape: f32[1,1,32], index: 0, kind: input, shape index: {}]
  %s1 = inlined_call_operand.vmem [shape: f32[1,1,32], index: 1, kind: input, shape index: {}]
  %s2 = inlined_call_operand.vmem [shape: f32[1,1,32], index: 2, kind: input, shape index: {}]
  %s3 = inlined_call_operand.hbm [shape: f32[64,128], index: 3, kind: input, shape index: {}]
  %s4 = inlined_call_operand.vmem [shape: f32[1,128], index: 4, kind: input, shape index: {}]
  %s5 = inlined_call_operand.hbm [shape: f32[32,128], index: 5, kind: input, shape index: {}]
  %s6 = inlined_call_operand.vmem [shape: f32[1,128], index: 6, kind: input, shape index: {}]
  %s7 = inlined_call_operand.hbm [shape: f32[128,128], index: 7, kind: input, shape index: {}]
  %s8 = inlined_call_operand.vmem [shape: f32[1,128], index: 8, kind: input, shape index: {}]
  %s9 = inlined_call_operand.vmem [shape: f32[1,128], index: 9, kind: input, shape index: {}]
  %s10 = inlined_call_operand.<no memory space> [shape: f32[1,1], index: 10, kind: input, shape index: {}]
  %s11 = inlined_call_operand.hbm [shape: f32[1,1,1], index: 11, kind: output, shape index: {0}]
  %s12 = inlined_call_operand.hbm [shape: f32[1,1,32], index: 12, kind: output, shape index: {1}]
  %s13 = inlined_call_operand.hbm [shape: f32[1,1,32], index: 13, kind: output, shape index: {2}]
  %14 = xla_tuple %s11, %s12, %s13
  %s15 = sld [smem:[#allocation0]]
  $region82: #{tpu_custom_call.1} parent=0
    _
  %s17 = ssub.s32 1, %s15
  %s18 = scalar_select 0, %s17, %s15
  %v19 = vstv %s10
  %20 = vst [vmem:[#allocation2] sm:$0x1] %v19
  $region1: #{tpu_custom_call.1} parent=0
    #allocation3 [shape = 'u8[32768]{0}', space=vmem, size = 0x8000, scoped, tag = 'input window, operand 3, single buffered']
    #allocation4 [shape = 's32[1]{0}', space=sflag, size = 0x4, scoped, tag = 'scoped memory for tpu_custom_call.1']
    #allocation5 [shape = 's32[1]{0}', space=sflag, size = 0x4, scoped, tag = 'scoped memory for tpu_custom_call.1']
    #allocation6 [shape = 'u8[16384]{0}', space=vmem, size = 0x4000, scoped, tag = 'input window, operand 5, single buffered']
    #allocation7 [shape = 's32[1]{0}', space=sflag, size = 0x4, scoped, tag = 'scoped memory for tpu_custom_call.1']
    #allocation8 [shape = 'u8[65536]{0}', space=vmem, size = 0x10000, scoped, tag = 'input window, operand 7, single buffered']
    #allocation9 [shape = 'u8[512]{0}', space=vmem, size = 0x400, scoped, tag = 'output window, operand 0, single buffered']
    #allocation10 [shape = 'u8[512]{0}', space=vmem, size = 0x400, scoped, tag = 'output window, operand 1, single buffered']
    #allocation11 [shape = 's32[1]{0}', space=sflag, size = 0x4, scoped, tag = 'scoped memory for tpu_custom_call.1']
    #allocation12 [shape = 'u8[512]{0}', space=vmem, size = 0x400, scoped, tag = 'output window, operand 2, single buffered']
    %21 = vsyncpa [#allocation4], 0
    %22 = vsyncpa [#allocation7], 0
    %23 = vsyncpa [#allocation5], 0
    %24 = vsyncpa [#allocation11], 0
    // Predicated region
    $region2: #{tpu_custom_call.1} parent=1 // pred_check
      _
    $region3: #{tpu_custom_call.1} parent=1 // pred_check_branch
      %26 = sbr.rel (0) target = $region5
    $region4: #{tpu_custom_call.1} parent=1 // pred_region
      _
    $region5: #{tpu_custom_call.1} parent=1 // pred_fallthru
      _
    // Predicated region
    $region6: #{tpu_custom_call.1} parent=1 // pred_check
      _
    $region7: #{tpu_custom_call.1} parent=1 // pred_check_branch
      %28 = sbr.rel (0) target = $region9
    $region8: #{tpu_custom_call.1} parent=1 // pred_region
      _
    $region9: #{tpu_custom_call.1} parent=1 // pred_fallthru
      _
    // Predicated region
    $region10: #{tpu_custom_call.1} parent=1 // pred_check
      _
    $region11: #{tpu_custom_call.1} parent=1 // pred_check_branch
      %30 = sbr.rel (0) target = $region13
    $region12: #{tpu_custom_call.1} parent=1 // pred_region
      _
    $region13: #{tpu_custom_call.1} parent=1 // pred_fallthru
      _
    // Predicated region
    $region14: #{tpu_custom_call.1} parent=1 // pred_check
      _
    $region15: #{tpu_custom_call.1} parent=1 // pred_check_branch
      %32 = sbr.rel (0) target = $region17
    $region16: #{tpu_custom_call.1} parent=1 // pred_region
      %s34 = ssub.s32 1024, 1024
      %35 = vsyncadd [#allocation4], %s34
      %s36 = sshll.u32 [#allocation3], 4
      %s37 = int_to_ptr.vmem [resolvable:$true] %s36
      %42 = dma.hbm_to_vmem [thread:$0]  %s3, 1024, %s37, [#allocation4], 128, 128, 8
    $region17: #{tpu_custom_call.1} parent=1 // pred_fallthru
      _
    // Predicated region
    $region18: #{tpu_custom_call.1} parent=1 // pred_check
      _
    $region19: #{tpu_custom_call.1} parent=1 // pred_check_branch
      %44 = sbr.rel (0) target = $region21
    $region20: #{tpu_custom_call.1} parent=1 // pred_region
      _
    $region21: #{tpu_custom_call.1} parent=1 // pred_fallthru
      _
    // Predicated region
    $region22: #{tpu_custom_call.1} parent=1 // pred_check
      _
    $region23: #{tpu_custom_call.1} parent=1 // pred_check_branch
      %46 = sbr.rel (0) target = $region25
    $region24: #{tpu_custom_call.1} parent=1 // pred_region
      %s48 = ssub.s32 512, 512
      %49 = vsyncadd [#allocation7], %s48
      %s50 = sshll.u32 [#allocation6], 4
      %s51 = int_to_ptr.vmem [resolvable:$true] %s50
      %56 = dma.hbm_to_vmem [thread:$0]  %s5, 512, %s51, [#allocation7], 128, 128, 8
    $region25: #{tpu_custom_call.1} parent=1 // pred_fallthru
      _
    // Predicated region
    $region26: #{tpu_custom_call.1} parent=1 // pred_check
      _
    $region27: #{tpu_custom_call.1} parent=1 // pred_check_branch
      %58 = sbr.rel (0) target = $region29
    $region28: #{tpu_custom_call.1} parent=1 // pred_region
      _
    $region29: #{tpu_custom_call.1} parent=1 // pred_fallthru
      _
    // Predicated region
    $region30: #{tpu_custom_call.1} parent=1 // pred_check
      _
    $region31: #{tpu_custom_call.1} parent=1 // pred_check_branch
      %60 = sbr.rel (0) target = $region33
    $region32: #{tpu_custom_call.1} parent=1 // pred_region
      %s62 = ssub.s32 2048, 2048
      %63 = vsyncadd [#allocation7], %s62
      %s64 = sshll.u32 [#allocation8], 4
      %s65 = int_to_ptr.vmem [resolvable:$true] %s64
      %70 = dma.hbm_to_vmem [thread:$0]  %s7, 2048, %s65, [#allocation7], 128, 128, 8
    $region33: #{tpu_custom_call.1} parent=1 // pred_fallthru
      _
    // Predicated region
    $region34: #{tpu_custom_call.1} parent=1 // pred_check
      _
    $region35: #{tpu_custom_call.1} parent=1 // pred_check_branch
      %72 = sbr.rel (0) target = $region37
    $region36: #{tpu_custom_call.1} parent=1 // pred_region
      _
    $region37: #{tpu_custom_call.1} parent=1 // pred_fallthru
      _
    // Predicated region
    $region38: #{tpu_custom_call.1} parent=1 // pred_check
      _
    $region39: #{tpu_custom_call.1} parent=1 // pred_check_branch
      %74 = sbr.rel (0) target = $region41
    $region40: #{tpu_custom_call.1} parent=1 // pred_region
      _
    $region41: #{tpu_custom_call.1} parent=1 // pred_fallthru
      _
    // Predicated region
    $region42: #{tpu_custom_call.1} parent=1 // pred_check
      _
    $region43: #{tpu_custom_call.1} parent=1 // pred_check_branch
      %76 = sbr.rel (0) target = $region45
    $region44: #{tpu_custom_call.1} parent=1 // pred_region
      _
    $region45: #{tpu_custom_call.1} parent=1 // pred_fallthru
      _
    // Predicated region
    $region46: #{tpu_custom_call.1} parent=1 // pred_check
      _
    $region47: #{tpu_custom_call.1} parent=1 // pred_check_branch
      %78 = sbr.rel (0) target = $region49
    $region48: #{tpu_custom_call.1} parent=1 // pred_region
      %79 = dma.done [#allocation4], 1024
    $region49: #{tpu_custom_call.1} parent=1 // pred_fallthru
      _
    // Predicated region
    $region50: #{tpu_custom_call.1} parent=1 // pred_check
      _
    $region51: #{tpu_custom_call.1} parent=1 // pred_check_branch
      %81 = sbr.rel (0) target = $region53
    $region52: #{tpu_custom_call.1} parent=1 // pred_region
      %82 = dma.done [#allocation7], 512
    $region53: #{tpu_custom_call.1} parent=1 // pred_fallthru
      _
    // Predicated region
    $region54: #{tpu_custom_call.1} parent=1 // pred_check
      _
    $region55: #{tpu_custom_call.1} parent=1 // pred_check_branch
      %84 = sbr.rel (0) target = $region57
    $region56: #{tpu_custom_call.1} parent=1 // pred_region
      %85 = dma.done [#allocation7], 2048
    $region57: #{tpu_custom_call.1} parent=1 // pred_fallthru
      _
    %v86 = vld [vmem:[#allocation3] sm:$0xff]
    %v87 = vld [vmem:[#allocation3 + $0x8] sm:$0xff]
    %v88 = vld [vmem:[#allocation3 + $0x10] sm:$0xff]
    %v89 = vld [vmem:[#allocation3 + $0x18] sm:$0xff]
    %v90 = vld [vmem:[#allocation3 + $0x20] sm:$0xff]
    %v91 = vld [vmem:[#allocation3 + $0x28] sm:$0xff]
    %v92 = vld [vmem:[#allocation3 + $0x30] sm:$0xff]
    %v93 = vld [vmem:[#allocation3 + $0x38] sm:$0xff]
    %v94 = vld [vmem:[%s4] sm:$0x1]
    %v95 = vld [vmem:[#allocation6] sm:$0xff]
    %v96 = vld [vmem:[#allocation6 + $0x8] sm:$0xff]
    %v97 = vld [vmem:[#allocation6 + $0x10] sm:$0xff]
    %v98 = vld [vmem:[#allocation6 + $0x18] sm:$0xff]
    %v99 = vld [vmem:[%s6] sm:$0x1]
    %v100 = vld [vmem:[#allocation8] sm:$0xff]
    %v101 = vld [vmem:[#allocation8 + $0x8] sm:$0xff]
    %v102 = vld [vmem:[#allocation8 + $0x10] sm:$0xff]
    %v103 = vld [vmem:[#allocation8 + $0x18] sm:$0xff]
    %v104 = vld [vmem:[#allocation8 + $0x20] sm:$0xff]
    %v105 = vld [vmem:[#allocation8 + $0x28] sm:$0xff]
    %v106 = vld [vmem:[#allocation8 + $0x30] sm:$0xff]
    %v107 = vld [vmem:[#allocation8 + $0x38] sm:$0xff]
    %v108 = vld [vmem:[#allocation8 + $0x40] sm:$0xff]
    %v109 = vld [vmem:[#allocation8 + $0x48] sm:$0xff]
    %v110 = vld [vmem:[#allocation8 + $0x50] sm:$0xff]
    %v111 = vld [vmem:[#allocation8 + $0x58] sm:$0xff]
    %v112 = vld [vmem:[#allocation8 + $0x60] sm:$0xff]
    %v113 = vld [vmem:[#allocation8 + $0x68] sm:$0xff]
    %v114 = vld [vmem:[#allocation8 + $0x70] sm:$0xff]
    %v115 = vld [vmem:[#allocation8 + $0x78] sm:$0xff]
    %v116 = vld [vmem:[%s8] sm:$0x1]
    %v117 = vld [vmem:[%s9] sm:$0x1]
    %v118 = vld [vmem:[#allocation2] sm:$0x1]
    %v119 = vlaneseq
    %v120 = vand.u32 %v119, 127
    %vm121 = vcmp.ge.s32.totalorder %v120, 64
    %vm122 = vcmp.lt.s32.totalorder %v120, 96
    %vm123 = vmand %vm121, %vm122
    %v124 = vld [vmem:[%s1] sm:$0x1]
    %v125 = vld [vmem:[%s2] sm:$0x1]
    %v126 = vld [vmem:[%s0] sm:$0x1]
    %v128 = vlaneseq
    %v129 = vshrl.u32 %v128, 7
    %v130 = vsub.s32 0, %v129
    %v131 = vrot.slane %v124, %v130
    %132 = vrot.lane.b32.xlu0 %v131, 32
    %v133 = vpop.permute.xlu0 %132
    %vm135 = vcmask 261120
    %v136 = vsel %vm135, %v126, %v133
    %vm137 = vcmask 523264
    %v139 = vsel %vm137, %v136, 0
    %141 = vmatprep.subr.mxu0 0.0
    %142 = vmatpush1.msra.mxu0 0.0
    %143 = vmatprep.subr.mxu0 0.0
    %144 = vmatpush1.msra.mxu0 0.0
    %145 = vmatprep.subr.mxu0 0.0
    %146 = vmatpush1.msra.mxu0 0.0
    %147 = vmatprep.subr.mxu0 0.0
    %148 = vmatpush1.msra.mxu0 0.0
    %149 = vmatprep.subr.mxu0 0.0
    %150 = vmatpush1.msra.mxu0 0.0
    %151 = vmatprep.subr.mxu0 0.0
    %152 = vmatpush1.msra.mxu0 0.0
    %153 = vmatprep.subr.mxu0 0.0
    %154 = vmatpush1.msra.mxu0 0.0
    %155 = vmatprep.subr.mxu0 0.0
    %156 = vmatpush1.msra.mxu0 0.0
    %157 = vmatprep.subr.mxu0 0.0
    %158 = vmatpush1.msra.mxu0 %v93
    %159 = vmatprep.subr.mxu0 0.0
    %160 = vmatpush1.msra.mxu0 %v92
    %161 = vmatprep.subr.mxu0 0.0
    %162 = vmatpush1.msra.mxu0 %v91
    %163 = vmatprep.subr.mxu0 0.0
    %164 = vmatpush1.msra.mxu0 %v90
    %165 = vmatprep.subr.mxu0 0.0
    %166 = vmatpush1.msra.mxu0 %v89
    %167 = vmatprep.subr.mxu0 0.0
    %168 = vmatpush1.msra.mxu0 %v88
    %169 = vmatprep.subr.mxu0 0.0
    %170 = vmatpush1.msra.mxu0 %v87
    %171 = vmatprep.subr.mxu0 0.0
    %172 = vmatpush1.msra.mxu0 %v86
    %173 = vmatprep.subr.mxu0 0.0
    %174 = vmatpush2.msra.mxu0 0.0
    %175 = vmatprep.subr.mxu0 0.0
    %176 = vmatpush2.msra.mxu0 0.0
    %177 = vmatprep.subr.mxu0 0.0
    %178 = vmatpush2.msra.mxu0 0.0
    %179 = vmatprep.subr.mxu0 0.0
    %180 = vmatpush2.msra.mxu0 0.0
    %181 = vmatprep.subr.mxu0 0.0
    %182 = vmatpush2.msra.mxu0 0.0
    %183 = vmatprep.subr.mxu0 0.0
    %184 = vmatpush2.msra.mxu0 0.0
    %185 = vmatprep.subr.mxu0 0.0
    %186 = vmatpush2.msra.mxu0 0.0
    %187 = vmatprep.subr.mxu0 0.0
    %188 = vmatpush2.msra.mxu0 0.0
    %189 = vmatprep.subr.mxu0 0.0
    %190 = vmatpush2.msra.mxu0 0.0
    %191 = vmatprep.subr.mxu0 0.0
    %192 = vmatpush2.msra.mxu0 0.0
    %193 = vmatprep.subr.mxu0 0.0
    %194 = vmatpush2.msra.mxu0 0.0
    %195 = vmatprep.subr.mxu0 0.0
    %196 = vmatpush2.msra.mxu0 0.0
    %197 = vmatprep.subr.mxu0 0.0
    %198 = vmatpush2.msra.mxu0 0.0
    %199 = vmatprep.subr.mxu0 0.0
    %200 = vmatpush2.msra.mxu0 0.0
    %201 = vmatprep.subr.mxu0 0.0
    %202 = vmatpush2.msra.mxu0 0.0
    %203 = vmatprep.subr.mxu0 0.0
    %204 = vmatpush2.msra.mxu0 0.0
    %205 = vmatprep.mubr.f32.mxu0 0.0
    %206 = vmatmul.mubr.f32.gmra.mxu0 %v139
    %v207 = vpop.f32.mrf.mxu0
    %v208 = vadd.f32 %v94, %v207
    %v209 = vpop.f32.mrf.mxu0
    %210 = vdwg.mxu0
    %v211 = vxor.u32 %v208, 2147483648
    %v212 = vmul.f32 %v211, 1.442695
    %v213 = vpow.pop %v212
    %v214 = vadd.f32 %v213, 1.0
    %v215 = vrcp.pop %v214
    %v216 = vmul.f32 1.0, %v215
    %v217 = vtanh.pop %v208
    %v218 = vsel %vm123, %v217, %v216
    %v220 = vlaneseq
    %v221 = vshrl.u32 %v220, 7
    %v222 = vsub.s32 0, %v221
    %v223 = vrot.slane %v125, %v222
    %224 = vrot.lane.b32.xlu0 %v223, 32
    %v225 = vpop.permute.xlu0 %224
    %v227 = vmul.f32 %v218, %v225
    %229 = vrot.lane.b32.xlu0 %v218, 64
    %v230 = vpop.permute.xlu0 %229
    %v232 = vmul.f32 %v218, %v230
    %234 = vrot.lane.b32.xlu0 %v232, 32
    %v235 = vpop.permute.xlu0 %234
    %v237 = vadd.f32 %v227, %v235
    %v238 = vtanh.pop %v237
    %240 = vrot.lane.b32.xlu0 %v238, 64
    %v241 = vpop.permute.xlu0 %240
    %v243 = vmul.f32 %v218, %v241
    %245 = vrot.lane.b32.xlu0 %v243, 32
    %v246 = vpop.permute.xlu0 %245
    %v247 = vsel %vm135, %v246, 0
    %249 = vmatprep.subr.mxu0 0.0
    %250 = vmatpush1.msra.mxu0 0.0
    %251 = vmatprep.subr.mxu0 0.0
    %252 = vmatpush1.msra.mxu0 0.0
    %253 = vmatprep.subr.mxu0 0.0
    %254 = vmatpush1.msra.mxu0 0.0
    %255 = vmatprep.subr.mxu0 0.0
    %256 = vmatpush1.msra.mxu0 0.0
    %257 = vmatprep.subr.mxu0 0.0
    %258 = vmatpush1.msra.mxu0 0.0
    %259 = vmatprep.subr.mxu0 0.0
    %260 = vmatpush1.msra.mxu0 0.0
    %261 = vmatprep.subr.mxu0 0.0
    %262 = vmatpush1.msra.mxu0 0.0
    %263 = vmatprep.subr.mxu0 0.0
    %264 = vmatpush1.msra.mxu0 0.0
    %265 = vmatprep.subr.mxu0 0.0
    %266 = vmatpush1.msra.mxu0 0.0
    %267 = vmatprep.subr.mxu0 0.0
    %268 = vmatpush1.msra.mxu0 0.0
    %269 = vmatprep.subr.mxu0 0.0
    %270 = vmatpush1.msra.mxu0 0.0
    %271 = vmatprep.subr.mxu0 0.0
    %272 = vmatpush1.msra.mxu0 0.0
    %273 = vmatprep.subr.mxu0 0.0
    %274 = vmatpush1.msra.mxu0 %v98
    %275 = vmatprep.subr.mxu0 0.0
    %276 = vmatpush1.msra.mxu0 %v97
    %277 = vmatprep.subr.mxu0 0.0
    %278 = vmatpush1.msra.mxu0 %v96
    %279 = vmatprep.subr.mxu0 0.0
    %280 = vmatpush1.msra.mxu0 %v95
    %281 = vmatprep.subr.mxu0 0.0
    %282 = vmatpush2.msra.mxu0 0.0
    %283 = vmatprep.subr.mxu0 0.0
    %284 = vmatpush2.msra.mxu0 0.0
    %285 = vmatprep.subr.mxu0 0.0
    %286 = vmatpush2.msra.mxu0 0.0
    %287 = vmatprep.subr.mxu0 0.0
    %288 = vmatpush2.msra.mxu0 0.0
    %289 = vmatprep.subr.mxu0 0.0
    %290 = vmatpush2.msra.mxu0 0.0
    %291 = vmatprep.subr.mxu0 0.0
    %292 = vmatpush2.msra.mxu0 0.0
    %293 = vmatprep.subr.mxu0 0.0
    %294 = vmatpush2.msra.mxu0 0.0
    %295 = vmatprep.subr.mxu0 0.0
    %296 = vmatpush2.msra.mxu0 0.0
    %297 = vmatprep.subr.mxu0 0.0
    %298 = vmatpush2.msra.mxu0 0.0
    %299 = vmatprep.subr.mxu0 0.0
    %300 = vmatpush2.msra.mxu0 0.0
    %301 = vmatprep.subr.mxu0 0.0
    %302 = vmatpush2.msra.mxu0 0.0
    %303 = vmatprep.subr.mxu0 0.0
    %304 = vmatpush2.msra.mxu0 0.0
    %305 = vmatprep.subr.mxu0 0.0
    %306 = vmatpush2.msra.mxu0 0.0
    %307 = vmatprep.subr.mxu0 0.0
    %308 = vmatpush2.msra.mxu0 0.0
    %309 = vmatprep.subr.mxu0 0.0
    %310 = vmatpush2.msra.mxu0 0.0
    %311 = vmatprep.subr.mxu0 0.0
    %312 = vmatpush2.msra.mxu0 0.0
    %313 = vmatprep.mubr.f32.mxu0 0.0
    %314 = vmatmul.mubr.f32.gmra.mxu0 %v247
    %v315 = vpop.f32.mrf.mxu0
    %v316 = vadd.f32 %v99, %v315
    %v317 = vpop.f32.mrf.mxu0
    %318 = vdwg.mxu0
    %v319 = vmul.f32 %v316, 0.01
    %v320 = vmax.f32 %v316, %v319
    %321 = vmatprep.subr.mxu0 0.0
    %322 = vmatpush1.msra.mxu0 %v115
    %323 = vmatprep.subr.mxu0 0.0
    %324 = vmatpush1.msra.mxu0 %v114
    %325 = vmatprep.subr.mxu0 0.0
    %326 = vmatpush1.msra.mxu0 %v113
    %327 = vmatprep.subr.mxu0 0.0
    %328 = vmatpush1.msra.mxu0 %v112
    %329 = vmatprep.subr.mxu0 0.0
    %330 = vmatpush1.msra.mxu0 %v111
    %331 = vmatprep.subr.mxu0 0.0
    %332 = vmatpush1.msra.mxu0 %v110
    %333 = vmatprep.subr.mxu0 0.0
    %334 = vmatpush1.msra.mxu0 %v109
    %335 = vmatprep.subr.mxu0 0.0
    %336 = vmatpush1.msra.mxu0 %v108
    %337 = vmatprep.subr.mxu0 0.0
    %338 = vmatpush1.msra.mxu0 %v107
    %339 = vmatprep.subr.mxu0 0.0
    %340 = vmatpush1.msra.mxu0 %v106
    %341 = vmatprep.subr.mxu0 0.0
    %342 = vmatpush1.msra.mxu0 %v105
    %343 = vmatprep.subr.mxu0 0.0
    %344 = vmatpush1.msra.mxu0 %v104
    %345 = vmatprep.subr.mxu0 0.0
    %346 = vmatpush1.msra.mxu0 %v103
    %347 = vmatprep.subr.mxu0 0.0
    %348 = vmatpush1.msra.mxu0 %v102
    %349 = vmatprep.subr.mxu0 0.0
    %350 = vmatpush1.msra.mxu0 %v101
    %351 = vmatprep.subr.mxu0 0.0
    %352 = vmatpush1.msra.mxu0 %v100
    %353 = vmatprep.subr.mxu0 0.0
    %354 = vmatpush2.msra.mxu0 0.0
    %355 = vmatprep.subr.mxu0 0.0
    %356 = vmatpush2.msra.mxu0 0.0
    %357 = vmatprep.subr.mxu0 0.0
    %358 = vmatpush2.msra.mxu0 0.0
    %359 = vmatprep.subr.mxu0 0.0
    %360 = vmatpush2.msra.mxu0 0.0
    %361 = vmatprep.subr.mxu0 0.0
    %362 = vmatpush2.msra.mxu0 0.0
    %363 = vmatprep.subr.mxu0 0.0
    %364 = vmatpush2.msra.mxu0 0.0
    %365 = vmatprep.subr.mxu0 0.0
    %366 = vmatpush2.msra.mxu0 0.0
    %367 = vmatprep.subr.mxu0 0.0
    %368 = vmatpush2.msra.mxu0 0.0
    %369 = vmatprep.subr.mxu0 0.0
    %370 = vmatpush2.msra.mxu0 0.0
    %371 = vmatprep.subr.mxu0 0.0
    %372 = vmatpush2.msra.mxu0 0.0
    %373 = vmatprep.subr.mxu0 0.0
    %374 = vmatpush2.msra.mxu0 0.0
    %375 = vmatprep.subr.mxu0 0.0
    %376 = vmatpush2.msra.mxu0 0.0
    %377 = vmatprep.subr.mxu0 0.0
    %378 = vmatpush2.msra.mxu0 0.0
    %379 = vmatprep.subr.mxu0 0.0
    %380 = vmatpush2.msra.mxu0 0.0
    %381 = vmatprep.subr.mxu0 0.0
    %382 = vmatpush2.msra.mxu0 0.0
    %383 = vmatprep.subr.mxu0 0.0
    %384 = vmatpush2.msra.mxu0 0.0
    %385 = vmatprep.mubr.f32.mxu0 0.0
    %386 = vmatmul.mubr.f32.gmra.mxu0 %v320
    %v387 = vpop.f32.mrf.mxu0
    %v388 = vadd.f32 %v116, %v387
    %v389 = vpop.f32.mrf.mxu0
    %390 = vdwg.mxu0
    %v391 = vmul.f32 %v388, 0.01
    %v392 = vmax.f32 %v388, %v391
    %v393 = vmul.f32 %v392, %v117
    %vm394 = vcmask 1040384
    %v395 = vsel %vm394, %v393, 0.0
    %396 = vadd.xlane.f32.xlu0 %v395
    %v397 = vpop.xlane.xlu0 %396
    %v398 = vadd.f32 %v397, %v118
    %vm399 = vcmask 0
    %400 = vst.msk [vmem:[#allocation9] sm:$0x1] %vm399, %v398
    %vm402 = vcmask 253952
    %403 = vst.msk [vmem:[#allocation10] sm:$0x1] %vm402, %v246
    %405 = vrot.lane.b32.xlu0 %v237, 96
    %v406 = vpop.permute.xlu0 %405
    %408 = vst.msk [vmem:[#allocation12] sm:$0x1] %vm402, %v406
    // Predicated region
    $region58: #{tpu_custom_call.1} parent=1 // pred_check
      _
    $region59: #{tpu_custom_call.1} parent=1 // pred_check_branch
      %410 = sbr.rel (0) target = $region61
    $region60: #{tpu_custom_call.1} parent=1 // pred_region
      %s412 = ssub.s32 16, 16
      %413 = vsyncadd [#allocation5], %s412
      %s415 = sshll.u32 [#allocation9], 4
      %s416 = int_to_ptr.vmem [resolvable:$true] %s415
      %418 = dma.vmem_to_hbm [thread:$0]  %s416, 16, %s11, [#allocation5]
    $region61: #{tpu_custom_call.1} parent=1 // pred_fallthru
      _
    // Predicated region
    $region62: #{tpu_custom_call.1} parent=1 // pred_check
      _
    $region63: #{tpu_custom_call.1} parent=1 // pred_check_branch
      %420 = sbr.rel (0) target = $region65
    $region64: #{tpu_custom_call.1} parent=1 // pred_region
      %s422 = ssub.s32 16, 16
      %423 = vsyncadd [#allocation11], %s422
      %s425 = sshll.u32 [#allocation10], 4
      %s426 = int_to_ptr.vmem [resolvable:$true] %s425
      %428 = dma.vmem_to_hbm [thread:$0]  %s426, 16, %s12, [#allocation11]
    $region65: #{tpu_custom_call.1} parent=1 // pred_fallthru
      _
    // Predicated region
    $region66: #{tpu_custom_call.1} parent=1 // pred_check
      _
    $region67: #{tpu_custom_call.1} parent=1 // pred_check_branch
      %430 = sbr.rel (0) target = $region69
    $region68: #{tpu_custom_call.1} parent=1 // pred_region
      %s432 = ssub.s32 16, 16
      %433 = vsyncadd [#allocation11], %s432
      %s435 = sshll.u32 [#allocation12], 4
      %s436 = int_to_ptr.vmem [resolvable:$true] %s435
      %438 = dma.vmem_to_hbm [thread:$0]  %s436, 16, %s13, [#allocation11]
    $region69: #{tpu_custom_call.1} parent=1 // pred_fallthru
      _
    // Predicated region
    $region70: #{tpu_custom_call.1} parent=1 // pred_check
      _
    $region71: #{tpu_custom_call.1} parent=1 // pred_check_branch
      %440 = sbr.rel (0) target = $region73
    $region72: #{tpu_custom_call.1} parent=1 // pred_region
      %441 = dma.done [#allocation5], 16
    $region73: #{tpu_custom_call.1} parent=1 // pred_fallthru
      _
    // Predicated region
    $region74: #{tpu_custom_call.1} parent=1 // pred_check
      _
    $region75: #{tpu_custom_call.1} parent=1 // pred_check_branch
      %443 = sbr.rel (0) target = $region77
    $region76: #{tpu_custom_call.1} parent=1 // pred_region
      %444 = dma.done [#allocation11], 16
    $region77: #{tpu_custom_call.1} parent=1 // pred_fallthru
      _
    // Predicated region
    $region78: #{tpu_custom_call.1} parent=1 // pred_check
      _
    $region79: #{tpu_custom_call.1} parent=1 // pred_check_branch
      %446 = sbr.rel (0) target = $region81
    $region80: #{tpu_custom_call.1} parent=1 // pred_region
      %447 = dma.done [#allocation11], 16
    $region81: #{tpu_custom_call.1} parent=1 // pred_fallthru
      _
    %448 = vsyncpa [#allocation4], 1
    %449 = vsyncpa [#allocation7], 1
    %450 = vsyncpa [#allocation5], 1
    %451 = vsyncpa [#allocation11], 1

</llo_original>
